<compile_context>
chip_gen: v7x
topology: tpu7x:2x2x1
jax: 0.10.0
libtpu: 0.0.40
codegen_flags: <defaults>
</compile_context>

<pallas_src>
import math
import jax
import jax.numpy as jnp
from jax import lax
from jax.experimental import pallas as pl
from jax.experimental.pallas import tpu as pltpu


def _make_logcosh_kernel(d_total: int, tk: int, needs_mask: bool):
    """Builds the kernel for grid = (row_tiles, d_tiles).

    Axis 1 is the D reduction ("arbitrary"); acc_ref is a (tm, 1) f32 VMEM
    scratch holding the running per-row sum of squares.
    """

    def kernel(x_ref, t_ref, o_ref, acc_ref):
        k = pl.program_id(1)

        @pl.when(k == 0)
        def _init():
            acc_ref[...] = jnp.zeros_like(acc_ref)

        # Cast BEFORE subtracting (avoids cancellation error for low-precision inputs).
        diff = x_ref[...].astype(jnp.float32) - t_ref[...].astype(jnp.float32)
        if needs_mask:
            # Zero lanes past the true feature dim (last partial D block) so
            # OOB garbage never corrupts valid rows' sums.
            col = k * tk + lax.broadcasted_iota(jnp.int32, diff.shape, 1)
            diff = jnp.where(col < d_total, diff, 0.0)
        acc_ref[...] += jnp.sum(diff * diff, axis=1, keepdims=True)

        @pl.when(k == pl.num_programs(1) - 1)
        def _finalize():
            x = jnp.sqrt(acc_ref[...])
            # log(cosh(x)) = x + log1p(exp(-2x)) - log(2); arg <= 0 -> no overflow.
            o_ref[...] = x + jnp.log1p(jnp.exp(-2.0 * x)) - math.log(2.0)

    return kernel


def _vmem_budget_bytes() -> int:
    """Generation-aware scoped-VMEM limit (v7x: 64 MiB/TC, v5e/v6e: 128 MiB)."""
    try:
        cap = int(getattr(pltpu.get_tpu_info(), "vmem_capacity_bytes", 64 << 20))
    except Exception:
        cap = 64 << 20  # conservative (v7x per-TC) fallback
    # 48 MiB on v7x, 64 MiB on v5e/v6e -- always leaves compiler headroom.
    return min(cap * 3 // 4, 64 << 20)


def log_cosh_loss(inp: jax.Array, tgt: jax.Array, *, target_tile_bytes=None) -> jax.Array:
    assert inp.shape == tgt.shape
    assert inp.ndim == 2
    n, d = inp.shape
    itemsize = jnp.dtype(inp.dtype).itemsize

    vmem_limit = _vmem_budget_bytes()
    if target_tile_bytes is None:
        # 2 inputs x 2 pipeline buffers -> keep 4*tile within ~80% of the limit.
        target_tile_bytes = vmem_limit // 5

    # Sublane packing granularity: 8 rows for 32-bit, 16 for bf16, 32 for 8-bit.
    row_align = max(8, 32 // itemsize)

    # Feature-dim tiling: single full-D block unless even a (row_align, D) slab
    # would blow the per-input budget; then split D in 128-lane multiples.
    if d * itemsize * row_align <= target_tile_bytes:
        tk = d
    else:
        tk = max(128, (target_tile_bytes // (row_align * itemsize)) // 128 * 128)
        tk = min(tk, pl.cdiv(d, 128) * 128)
    k_tiles = pl.cdiv(d, tk)
    needs_mask = (d % tk) != 0

    # Row tile: as large as the byte budget allows (no artificial cap), rounded
    # to the packing granularity and clipped to the (aligned) row count.
    tm = (target_tile_bytes // max(1, tk * itemsize)) // row_align * row_align
    tm = max(row_align, tm)
    tm = min(tm, pl.cdiv(n, row_align) * row_align)

    grid = (pl.cdiv(n, tm), k_tiles)

    per_row = pl.pallas_call(
        _make_logcosh_kernel(d, tk, needs_mask),
        out_shape=jax.ShapeDtypeStruct((n, 1), jnp.float32),
        grid_spec=pltpu.PrefetchScalarGridSpec(
            num_scalar_prefetch=0,
            grid=grid,
            in_specs=[
                pl.BlockSpec((tm, tk), lambda i, k: (i, k)),
                pl.BlockSpec((tm, tk), lambda i, k: (i, k)),
            ],
            out_specs=pl.BlockSpec((tm, 1), lambda i, k: (i, 0)),
            scratch_shapes=[pltpu.VMEM((tm, 1), jnp.float32)],
        ),
        compiler_params=pltpu.CompilerParams(
            # Row-tile axis is independent (megacore-shardable on v7x);
            # the D axis reduces into the VMEM accumulator.
            # TODO(synk): verify in xprof that both v7x TensorCores are used;
            # if not, split the row grid explicitly across a core axis.
            dimension_semantics=("parallel", "arbitrary"),
            vmem_limit_bytes=vmem_limit,
        ),
        cost_estimate=pl.CostEstimate(
            flops=int(3 * n * d + 4 * n),
            transcendentals=int(3 * n),
            bytes_accessed=int(2 * n * d * itemsize + n * 4),
        ),
    )(inp, tgt)

    # per_row has exactly n rows (no wrapper padding copies); OOB rows of the
    # last grid block are never written back.
    return jnp.mean(per_row)


def _reference(inp, tgt):
    x = jnp.sqrt(jnp.sum(jnp.square(inp.astype(jnp.float32) - tgt.astype(jnp.float32)), axis=1))
    sp = jnp.log1p(jnp.exp(-2.0 * x))  # softplus(-2x), arg <= 0
    return jnp.mean(x + sp - math.log(2.0))


if __name__ == "__main__":
    key = jax.random.PRNGKey(0)
    k1, k2, k3, k4, k5, k6 = jax.random.split(key, 6)

    # Small 2-D (batch, features) shape consistent with the module's contract.
    N, D = 16, 32
    inp = jax.random.normal(k1, (N, D), dtype=jnp.float32)
    tgt = jax.random.normal(k2, (N, D), dtype=jnp.float32)
    out = jax.block_until_ready(log_cosh_loss(inp, tgt))
    ref = _reference(inp, tgt)
    assert jnp.allclose(out, ref, rtol=1e-5, atol=1e-5), (out, ref)

    # Unaligned shape: partial blocks in both dims, no wrapper padding copies.
    inp2 = jax.random.normal(k3, (37, 200), dtype=jnp.float32)
    tgt2 = jax.random.normal(k4, (37, 200), dtype=jnp.float32)
    out2 = jax.block_until_ready(log_cosh_loss(inp2, tgt2))
    ref2 = _reference(inp2, tgt2)
    assert jnp.allclose(out2, ref2, rtol=1e-5, atol=1e-5), (out2, ref2)

    # Exercise the large-D path (D reduction grid axis + lane mask) by forcing
    # a tiny per-input tile budget.
    inp3 = jax.random.normal(k5, (24, 700), dtype=jnp.float32)
    tgt3 = jax.random.normal(k6, (24, 700), dtype=jnp.float32)
    out3 = jax.block_until_ready(log_cosh_loss(inp3, tgt3, target_tile_bytes=16 << 10))
    ref3 = _reference(inp3, tgt3)
    assert jnp.allclose(out3, ref3, rtol=1e-5, atol=1e-5), (out3, ref3)

    print("KERNEL_OK")
</pallas_src>

<mosaic_0001>
module attributes {stable_mosaic.version = 11 : i64} {
  func.func @kernel(%arg0: i32, %arg1: i32, %arg2: memref<16x32xf32, #tpu.memory_space<vmem>>, %arg3: memref<16x32xf32, #tpu.memory_space<vmem>>, %arg4: memref<16x1xf32, #tpu.memory_space<vmem>>, %arg5: memref<16x1xf32, #tpu.memory_space<vmem>>) attributes {dimension_semantics = [#tpu.dimension_semantics<parallel>, #tpu.dimension_semantics<arbitrary>], iteration_bounds = array<i64: 1, 1>, scalar_prefetch = 0 : i64, scratch_operands = 1 : i64, tpu.core_type = #tpu.core_type<tc>, window_params = [{transform_indices = @transform_0, window_bounds = array<i64: 16, 32>}, {transform_indices = @transform_1, window_bounds = array<i64: 16, 32>}, {transform_indices = @transform_2, window_bounds = array<i64: 16, 1>}]} {
    %c0_i32 = arith.constant 0 : i32
    %0 = arith.cmpi eq, %arg1, %c0_i32 : i32
    %1 = arith.extui %0 : i1 to i32
    %c0_i32_0 = arith.constant 0 : i32
    %2 = arith.cmpi ne, %1, %c0_i32_0 : i32
    scf.if %2 {
      %cst_10 = arith.constant 0.000000e+00 : f32
      %15 = vector.broadcast %cst_10 : f32 to vector<16x1xf32>
      %c0_11 = arith.constant 0 : index
      %c0_12 = arith.constant 0 : index
      %16 = vector.load %arg5[%c0_11, %c0_12] : memref<16x1xf32, #tpu.memory_space<vmem>>, vector<16x1xf32>
      tpu.vector_store %arg5[%c0_11, %c0_12], %15 {strides = array<i32>} : memref<16x1xf32, #tpu.memory_space<vmem>>, vector<16x1xf32>,
    } else {
    }
    %c0 = arith.constant 0 : index
    %c0_1 = arith.constant 0 : index
    %3 = vector.load %arg2[%c0, %c0_1] : memref<16x32xf32, #tpu.memory_space<vmem>>, vector<16x32xf32>
    %c0_2 = arith.constant 0 : index
    %c0_3 = arith.constant 0 : index
    %4 = vector.load %arg3[%c0_2, %c0_3] : memref<16x32xf32, #tpu.memory_space<vmem>>, vector<16x32xf32>
    %5 = arith.subf %3, %4 : vector<16x32xf32>
    %c0_4 = arith.constant 0 : index
    %c0_5 = arith.constant 0 : index
    %6 = vector.load %arg5[%c0_4, %c0_5] : memref<16x1xf32, #tpu.memory_space<vmem>>, vector<16x1xf32>
    %7 = arith.mulf %5, %5 : vector<16x32xf32>
    %cst = arith.constant dense<0.000000e+00> : vector<16xf32>
    %8 = vector.multi_reduction <add>, %7, %cst [1] : vector<16x32xf32> to vector<16xf32>
    %9 = vector.shape_cast %8 : vector<16xf32> to vector<16x1xf32>
    %10 = arith.addf %6, %9 : vector<16x1xf32>
    %c0_6 = arith.constant 0 : index
    %c0_7 = arith.constant 0 : index
    %11 = vector.load %arg5[%c0_6, %c0_7] : memref<16x1xf32, #tpu.memory_space<vmem>>, vector<16x1xf32>
    tpu.vector_store %arg5[%c0_6, %c0_7], %10 {strides = array<i32>} : memref<16x1xf32, #tpu.memory_space<vmem>>, vector<16x1xf32>,
    %c0_i32_8 = arith.constant 0 : i32
    %12 = arith.cmpi eq, %arg1, %c0_i32_8 : i32
    %13 = arith.extui %12 : i1 to i32
    %c0_i32_9 = arith.constant 0 : i32
    %14 = arith.cmpi ne, %13, %c0_i32_9 : i32
    scf.if %14 {
      %c0_10 = arith.constant 0 : index
      %c0_11 = arith.constant 0 : index
      %15 = vector.load %arg5[%c0_10, %c0_11] : memref<16x1xf32, #tpu.memory_space<vmem>>, vector<16x1xf32>
      %16 = math.sqrt %15 : vector<16x1xf32>
      %cst_12 = arith.constant -2.000000e+00 : f32
      %17 = vector.broadcast %cst_12 : f32 to vector<16x1xf32>
      %18 = arith.mulf %17, %16 : vector<16x1xf32>
      %19 = math.exp %18 : vector<16x1xf32>
      %20 = math.log1p %19 : vector<16x1xf32>
      %21 = arith.addf %16, %20 : vector<16x1xf32>
      %cst_13 = arith.constant 0.693147182 : f32
      %22 = vector.broadcast %cst_13 : f32 to vector<16x1xf32>
      %23 = arith.subf %21, %22 : vector<16x1xf32>
      %c0_14 = arith.constant 0 : index
      %c0_15 = arith.constant 0 : index
      %24 = vector.load %arg4[%c0_14, %c0_15] : memref<16x1xf32, #tpu.memory_space<vmem>>, vector<16x1xf32>
      tpu.vector_store %arg4[%c0_14, %c0_15], %23 {strides = array<i32>} : memref<16x1xf32, #tpu.memory_space<vmem>>, vector<16x1xf32>,
    } else {
    }
    return
  }
  func.func @transform_0(%arg0: i32, %arg1: i32) -> (i32, i32) {
    %c0_i32 = arith.constant 0 : i32
    return %arg0, %arg1 : i32, i32
  }
  func.func @transform_1(%arg0: i32, %arg1: i32) -> (i32, i32) {
    %c0_i32 = arith.constant 0 : i32
    return %arg0, %arg1 : i32, i32
  }
  func.func @transform_2(%arg0: i32, %arg1: i32) -> (i32, i32) {
    %c0_i32 = arith.constant 0 : i32
    %c0_i32_0 = arith.constant 0 : i32
    return %arg0, %c0_i32 : i32, i32
  }
}

</mosaic_0001>

<llo_original>
// kernel: tpu_custom_call.1
$region0: #{tpu_custom_call.1}
  #allocation0 [shape = 'u32[]', space=smem, size = 0x4, offset = 0x4, fixed_abs, tag = 'smem constant byte address 0x4 - core index']
  #allocation1 [shape = 'u32[144,128]{1,0:T(1,128)}', space=vmem, size = 0x12000, scoped, tag = 'internal scratch']
  #allocation2 [shape = 'f32[16,1]{1,0:T(8,128)}', space=vmem, size = 0x2000, scoped, tag = 'scratch operand']
  %s0 = inlined_call_operand.hbm [shape: f32[16,32], index: 0, kind: input, shape index: {}]
  %s1 = inlined_call_operand.hbm [shape: f32[16,32], index: 1, kind: input, shape index: {}]
  %s2 = inlined_call_operand.vmem [shape: f32[16,1], index: 2, kind: output, shape index: {}]
  %s3 = sld [smem:[#allocation0]]
  $region34: #{tpu_custom_call.1} parent=0
    _
  %s5 = ssub.s32 1, %s3
  %s6 = scalar_select 0, %s5, %s3
  $region1: #{tpu_custom_call.1} parent=0
    #allocation3 [shape = 'u8[8192]{0}', space=vmem, size = 0x2000, scoped, tag = 'input window, operand 0, single buffered']
    #allocation4 [shape = 's32[1]{0}', space=sflag, size = 0x4, scoped, tag = 'scoped memory for tpu_custom_call.1']
    #allocation5 [shape = 'u8[8192]{0}', space=vmem, size = 0x2000, scoped, tag = 'input window, operand 1, single buffered']
    #allocation6 [shape = 's32[1]{0}', space=sflag, size = 0x4, scoped, tag = 'scoped memory for tpu_custom_call.1']
    %7 = vsyncpa [#allocation4], 0
    %8 = vsyncpa [#allocation6], 0
    // Predicated region
    $region2: #{tpu_custom_call.1} parent=1 // pred_check
      _
    $region3: #{tpu_custom_call.1} parent=1 // pred_check_branch
      %10 = sbr.rel (0) target = $region5
    $region4: #{tpu_custom_call.1} parent=1 // pred_region
      %s12 = ssub.s32 256, 256
      %13 = vsyncadd [#allocation4], %s12
      %s14 = sshll.u32 [#allocation3], 4
      %s15 = int_to_ptr.vmem [resolvable:$true] %s14
      %20 = dma.hbm_to_vmem [thread:$0]  %s0, 256, %s15, [#allocation4], 128, 128, 8
    $region5: #{tpu_custom_call.1} parent=1 // pred_fallthru
      _
    // Predicated region
    $region6: #{tpu_custom_call.1} parent=1 // pred_check
      _
    $region7: #{tpu_custom_call.1} parent=1 // pred_check_branch
      %22 = sbr.rel (0) target = $region9
    $region8: #{tpu_custom_call.1} parent=1 // pred_region
      %s24 = ssub.s32 256, 256
      %25 = vsyncadd [#allocation6], %s24
      %s26 = sshll.u32 [#allocation5], 4
      %s27 = int_to_ptr.vmem [resolvable:$true] %s26
      %32 = dma.hbm_to_vmem [thread:$0]  %s1, 256, %s27, [#allocation6], 128, 128, 8
    $region9: #{tpu_custom_call.1} parent=1 // pred_fallthru
      _
    // Predicated region
    $region10: #{tpu_custom_call.1} parent=1 // pred_check
      _
    $region11: #{tpu_custom_call.1} parent=1 // pred_check_branch
      %34 = sbr.rel (0) target = $region13
    $region12: #{tpu_custom_call.1} parent=1 // pred_region
      %35 = dma.done [#allocation4], 256
    $region13: #{tpu_custom_call.1} parent=1 // pred_fallthru
      _
    // Predicated region
    $region14: #{tpu_custom_call.1} parent=1 // pred_check
      _
    $region15: #{tpu_custom_call.1} parent=1 // pred_check_branch
      %37 = sbr.rel (0) target = $region17
    $region16: #{tpu_custom_call.1} parent=1 // pred_region
      %38 = dma.done [#allocation6], 256
    $region17: #{tpu_custom_call.1} parent=1 // pred_fallthru
      _
    %p39 = scmp.eq.s32.totalorder 0, 0
    // Predicated region
    $region18: #{tpu_custom_call.1} parent=1 // pred_check
      %p40 = pneg %p39
    $region19: #{tpu_custom_call.1} parent=1 // pred_check_branch
      %42 = sbr.rel (%p40) target = $region21
    $region20: #{tpu_custom_call.1} parent=1 // pred_region
      %vm43 = vcmask 7168
      %44 = vst.msk [vmem:[#allocation2] sm:$0xff] %vm43, 0.0
      %45 = vst.msk [vmem:[#allocation2 + $0x8] sm:$0xff] %vm43, 0.0
    $region21: #{tpu_custom_call.1} parent=1 // pred_fallthru
      _
    %v46 = vld [vmem:[#allocation3] sm:$0xff]
    %v47 = vld [vmem:[#allocation3 + $0x8] sm:$0xff]
    %v48 = vld [vmem:[#allocation5] sm:$0xff]
    %v49 = vld [vmem:[#allocation5 + $0x8] sm:$0xff]
    %v50 = vsub.f32 %v46, %v48
    %v51 = vsub.f32 %v47, %v49
    %v52 = vld [vmem:[#allocation2] sm:$0xff]
    %v53 = vld [vmem:[#allocation2 + $0x8] sm:$0xff]
    %v54 = vmul.f32 %v50, %v50
    %v55 = vmul.f32 %v51, %v51
    %vm56 = vcmask 261120
    %v57 = vsel %vm56, %v54, 0.0
    %58 = vadd.xlane.f32.xlu0 %v57
    %v59 = vpop.xlane.xlu0 %58
    %v60 = vsel %vm56, %v55, 0.0
    %61 = vadd.xlane.f32.xlu0 %v60
    %v62 = vpop.xlane.xlu0 %61
    %v63 = vadd.f32 %v52, %v59
    %v64 = vadd.f32 %v53, %v62
    %vm65 = vcmask 7168
    %66 = vst.msk [vmem:[#allocation2] sm:$0xff] %vm65, %v63
    %67 = vst.msk [vmem:[#allocation2 + $0x8] sm:$0xff] %vm65, %v64
    // Predicated region
    $region22: #{tpu_custom_call.1} parent=1 // pred_check
      %p68 = pneg %p39
    $region23: #{tpu_custom_call.1} parent=1 // pred_check_branch
      %70 = sbr.rel (%p68) target = $region25
    $region24: #{tpu_custom_call.1} parent=1 // pred_region
      %v71 = vld [vmem:[#allocation2] sm:$0xff]
      %v72 = vld [vmem:[#allocation2 + $0x8] sm:$0xff]
      %v73 = vrsqrt.pop %v71
      %v74 = vmul.f32 %v71, %v73
      %vm75 = vcmp.eq.f32.partialorder %v71, inf
      %v76 = vsel %vm75, %v71, %v74
      %vm77 = vcmp.eq.f32.partialorder %v71, 0.0
      %v78 = vand.u32 %v71, 2147483648
      %v79 = vsel %vm77, %v78, %v76
      %v80 = vrsqrt.pop %v72
      %v81 = vmul.f32 %v72, %v80
      %vm82 = vcmp.eq.f32.partialorder %v72, inf
      %v83 = vsel %vm82, %v72, %v81
      %vm84 = vcmp.eq.f32.partialorder %v72, 0.0
      %v85 = vand.u32 %v72, 2147483648
      %v86 = vsel %vm84, %v85, %v83
      %v87 = vmul.f32 %v79, -2.0
      %v88 = vmul.f32 %v86, -2.0
      %v89 = vmul.f32 %v87, 1.442695
      %v90 = vpow.pop %v89
      %v91 = vmul.f32 %v88, 1.442695
      %v92 = vpow.pop %v91
      %v93 = vadd.f32 %v90, 1.0
      %v94 = vlog2.pop %v93
      %v95 = vmul.f32 %v94, 0.6931472
      %v96 = vmul.f32 -0.5, %v90
      %v97 = vadd.f32 %v96, 1.0
      %v98 = vmul.f32 %v97, %v90
      %v99 = vand.u32 2147483647, %v90
      %vm100 = vcmp.lt.f32.partialorder %v99, 0.0004427343
      %v101 = vsel %vm100, %v98, %v95
      %v102 = vadd.f32 %v92, 1.0
      %v103 = vlog2.pop %v102
      %v104 = vmul.f32 %v103, 0.6931472
      %v105 = vmul.f32 -0.5, %v92
      %v106 = vadd.f32 %v105, 1.0
      %v107 = vmul.f32 %v106, %v92
      %v108 = vand.u32 2147483647, %v92
      %vm109 = vcmp.lt.f32.partialorder %v108, 0.0004427343
      %v110 = vsel %vm109, %v107, %v104
      %v111 = vadd.f32 %v79, %v101
      %v112 = vadd.f32 %v86, %v110
      %v113 = vsub.f32 %v111, 0.6931472
      %v114 = vsub.f32 %v112, 0.6931472
      %115 = vst.msk [vmem:[%s2] sm:$0xff] %vm65, %v113
      %116 = vst.msk [vmem:[%s2 + $0x8] sm:$0xff] %vm65, %v114
    $region25: #{tpu_custom_call.1} parent=1 // pred_fallthru
      _
    // Predicated region
    $region26: #{tpu_custom_call.1} parent=1 // pred_check
      _
    $region27: #{tpu_custom_call.1} parent=1 // pred_check_branch
      %118 = sbr.rel (0) target = $region29
    $region28: #{tpu_custom_call.1} parent=1 // pred_region
      _
    $region29: #{tpu_custom_call.1} parent=1 // pred_fallthru
      _
    // Predicated region
    $region30: #{tpu_custom_call.1} parent=1 // pred_check
      _
    $region31: #{tpu_custom_call.1} parent=1 // pred_check_branch
      %120 = sbr.rel (0) target = $region33
    $region32: #{tpu_custom_call.1} parent=1 // pred_region
      _
    $region33: #{tpu_custom_call.1} parent=1 // pred_fallthru
      _
    %121 = vsyncpa [#allocation4], 1
    %122 = vsyncpa [#allocation6], 1

</llo_original>
